<compile_context>
chip_gen: v5e
topology: v5e:2x2
jax: 0.10.0
libtpu: 0.0.40
codegen_flags: <defaults>
</compile_context>

<pallas_src>
import functools

import jax
import jax.numpy as jnp
from jax.experimental import pallas as pl
from jax.experimental.pallas import tpu as pltpu


def _round_up(x, m):
    return ((x + m - 1) // m) * m


def _pick_batch_tile(b):
    """Batch tile: full dim for tiny B; otherwise a multiple of 8, capped at 512,
    aiming for >= 2 tiles so v7x's two TensorCores both get work."""
    if b <= 16:
        return b                      # full-dim block (always a legal block shape)
    tb = _round_up((b + 1) // 2, 8)   # >= 2 batch tiles
    return min(tb, 512)


def _pick_div_tile(dim, candidates):
    """Largest candidate (descending) that divides `dim`; else the full dim."""
    if dim <= max(candidates):
        return dim
    for cand in candidates:
        if dim % cand == 0:
            return cand
    return dim


def _fused_heads_kernel(x_ref, w_ref, b_ref, o_ref, acc_ref):
    # x_ref: (tb, tk) bf16, w_ref: (tk, tn) bf16, b_ref: (1, tn) f32,
    # o_ref: (tb, tn) f32, acc_ref: (tb, tn) f32 scratch.
    k = pl.program_id(2)

    @pl.when(k == 0)
    def _init():
        acc_ref[...] = jnp.zeros_like(acc_ref)

    acc_ref[...] += jnp.dot(
        x_ref[...], w_ref[...], preferred_element_type=jnp.float32
    )

    @pl.when(k == pl.num_programs(2) - 1)
    def _finalize():
        # Bias add in f32 on the accumulator (safe on v5e: no bf16 VPU needed).
        o_ref[...] = (acc_ref[...] + b_ref[...]).astype(o_ref.dtype)


def _fused_logits(x, w_all, b_all):
    """x: (B, D); w_all: (D, C_pad) bf16; b_all: (1, C_pad) f32 -> (B, C_pad) f32."""
    b_dim, d_dim = x.shape
    c_pad = w_all.shape[1]

    x = x.astype(w_all.dtype)  # feed the MXU in the weights' (bf16) dtype

    tb = _pick_batch_tile(b_dim)
    tn = _pick_div_tile(c_pad, (1024, 512, 256, 128))   # class tile (lane-dense)
    tk = _pick_div_tile(d_dim, (512, 256, 128))         # reduction tile

    n_b = pl.cdiv(b_dim, tb)   # ragged last batch block is masked by Pallas
    n_c = c_pad // tn
    n_k = d_dim // tk

    def _spec(shape, index_map, invariant):
        # Grid-invariant operands: one VMEM buffer is enough (double-buffering
        # a block that never changes just wastes VMEM).
        if invariant:
            return pl.BlockSpec(shape, index_map, pipeline_mode=pl.Buffered(1))
        return pl.BlockSpec(shape, index_map)

    x_spec = _spec((tb, tk), lambda i, j, k: (i, k), n_b == 1 and n_k == 1)
    w_spec = _spec((tk, tn), lambda i, j, k: (k, j), n_k == 1 and n_c == 1)
    b_spec = _spec((1, tn), lambda i, j, k: (0, j), n_c == 1)
    o_spec = pl.BlockSpec((tb, tn), lambda i, j, k: (i, j))

    itemsize = jnp.dtype(w_all.dtype).itemsize
    vmem_bytes = (
        tb * tk * itemsize * 2                                     # x tile, 2 bufs
        + tk * tn * itemsize * (1 if (n_k == 1 and n_c == 1) else 2)  # W tile
        + 8 * tn * 4 * 2                                           # bias row (sublane-padded)
        + tb * tn * 4 * 2                                          # out tile, 2 bufs
        + tb * tn * 4                                              # f32 accumulator
    )
    # Headroom for Mosaic-internal scratch; clamp to v7x's 64 MiB physical VMEM.
    vmem_limit = int(min(max(2 * vmem_bytes + (4 << 20), 16 << 20), 64 << 20))

    cost = pl.CostEstimate(
        flops=2 * b_dim * d_dim * c_pad,
        bytes_accessed=(
            b_dim * d_dim * itemsize     # x (bf16)
            + d_dim * c_pad * itemsize   # W_all (bf16)
            + c_pad * 4                  # bias
            + b_dim * c_pad * 4          # fused logits
        ),
        transcendentals=0,
    )

    return pl.pallas_call(
        _fused_heads_kernel,
        out_shape=jax.ShapeDtypeStruct((b_dim, c_pad), jnp.float32),
        grid_spec=pltpu.PrefetchScalarGridSpec(
            num_scalar_prefetch=0,
            grid=(n_b, n_c, n_k),
            in_specs=[x_spec, w_spec, b_spec],
            out_specs=o_spec,
            scratch_shapes=[pltpu.VMEM((tb, tn), jnp.float32)],
        ),
        compiler_params=pltpu.CompilerParams(
            dimension_semantics=("parallel", "parallel", "arbitrary"),
            vmem_limit_bytes=vmem_limit,
        ),
        cost_estimate=cost,
    )(x, w_all, b_all)


def _fused_forward(x, w_all, b_all, *, task_slices):
    out = _fused_logits(x, w_all, b_all)
    return {task: out[:, start:start + c] for task, start, c in task_slices}


class MultitaskClassifier:
    """JAX/Pallas port of the PyTorch MultitaskClassifier (dict of Linear heads)."""

    def __init__(self, input_dim, tasks, key, *, weight_dtype=jnp.bfloat16):
        self.tasks = dict(tasks)
        self.input_dim = input_dim
        self.params = {}  # per-task PyTorch-layout f32 params (for reference/inspection)

        bound = 1.0 / float(input_dim) ** 0.5
        w_cols, b_cols, slices = [], [], []
        offset = 0
        for task, num_classes in self.tasks.items():
            key, kw, kb = jax.random.split(key, 3)
            # Deterministic init mimicking nn.Linear's uniform(-1/sqrt(D), 1/sqrt(D)).
            w = jax.random.uniform(
                kw, (num_classes, input_dim), jnp.float32, -bound, bound
            )
            b = jax.random.uniform(kb, (num_classes,), jnp.float32, -bound, bound)
            self.params[task] = (w, b)
            w_cols.append(w.T)                      # (D, C_t)
            b_cols.append(b)                        # (C_t,)
            slices.append((task, offset, num_classes))
            offset += num_classes

        c_total = offset
        c_pad = _round_up(max(c_total, 1), 128)     # lane-dense fused class dim

        w_all = jnp.concatenate(w_cols, axis=1)     # (D, C_total)
        b_all = jnp.concatenate(b_cols, axis=0)     # (C_total,)
        if c_pad != c_total:
            w_all = jnp.pad(w_all, ((0, 0), (0, c_pad - c_total)))
            b_all = jnp.pad(b_all, ((0, c_pad - c_total),))

        # bf16 weights: full MXU rate and half the weight HBM / VMEM bytes.
        self.w_all = w_all.astype(weight_dtype)     # (D, C_pad)
        self.b_all = b_all.reshape(1, c_pad)        # (1, C_pad) f32
        self.c_pad = c_pad
        self._task_slices = tuple(slices)

        # One jitted forward for ALL heads (single dispatch, single kernel).
        self._forward = jax.jit(
            functools.partial(_fused_forward, task_slices=self._task_slices)
        )
        self._forward_fused = jax.jit(_fused_logits)

    def num_classes(self, task):
        return self.tasks[task]

    def forward(self, x):
        return self._forward(x, self.w_all, self.b_all)

    def forward_fused(self, x):
        """Raw fused (B, C_pad) logits + (task, start, size) map (no slice copies)."""
        return self._forward_fused(x, self.w_all, self.b_all), self._task_slices

    __call__ = forward


if __name__ == "__main__":
    key = jax.random.PRNGKey(0)
    key, kx, kp = jax.random.split(key, 3)

    batch = 2
    input_dim = 32
    tasks = {"task_a": 4, "task_b": 8, "task_c": 3}

    model = MultitaskClassifier(input_dim, tasks, kp)

    x = jax.random.normal(kx, (batch, input_dim), jnp.float32)

    logits = model(x)
    logits = jax.block_until_ready(logits)

    # Sanity check against plain-JAX references in the same precision regime
    # (bf16 inputs, f32 accumulation), plus a looser check vs the exact f32 math.
    for task, (w, b) in model.params.items():
        got = logits[task]
        assert got.shape == (batch, tasks[task]), task
        ref_bf16 = jnp.dot(
            x.astype(jnp.bfloat16), w.T.astype(jnp.bfloat16),
            preferred_element_type=jnp.float32,
        ) + b
        assert jnp.allclose(got, ref_bf16, atol=2e-2, rtol=2e-2), task
        ref_f32 = x @ w.T + b
        assert jnp.allclose(got, ref_f32, atol=5e-2, rtol=5e-2), task

    print("KERNEL_OK")
</pallas_src>

<mosaic_0001>
module attributes {stable_mosaic.version = 11 : i64} {
  func.func @_fused_heads_kernel(%arg0: i32, %arg1: i32, %arg2: i32, %arg3: memref<2x32xbf16, #tpu.memory_space<vmem>>, %arg4: memref<32x128xbf16, #tpu.memory_space<vmem>>, %arg5: memref<1x128xf32, #tpu.memory_space<vmem>>, %arg6: memref<2x128xf32, #tpu.memory_space<vmem>>, %arg7: memref<2x128xf32, #tpu.memory_space<vmem>>) attributes {dimension_semantics = [#tpu.dimension_semantics<parallel>, #tpu.dimension_semantics<parallel>, #tpu.dimension_semantics<arbitrary>], iteration_bounds = array<i64: 1, 1, 1>, scalar_prefetch = 0 : i64, scratch_operands = 1 : i64, tpu.core_type = #tpu.core_type<tc>, window_params = [{pipeline_mode = #tpu.pipeline_mode<synchronous>, transform_indices = @transform_0, window_bounds = array<i64: 2, 32>}, {pipeline_mode = #tpu.pipeline_mode<synchronous>, transform_indices = @transform_1, window_bounds = array<i64: 32, 128>}, {pipeline_mode = #tpu.pipeline_mode<synchronous>, transform_indices = @transform_2, window_bounds = array<i64: 1, 128>}, {transform_indices = @transform_3, window_bounds = array<i64: 2, 128>}]} {
    %c0_i32 = arith.constant 0 : i32
    %0 = arith.cmpi eq, %arg2, %c0_i32 : i32
    %1 = arith.extui %0 : i1 to i32
    %c0_i32_0 = arith.constant 0 : i32
    %2 = arith.cmpi ne, %1, %c0_i32_0 : i32
    scf.if %2 {
      %cst_10 = arith.constant 0.000000e+00 : f32
      %12 = vector.broadcast %cst_10 : f32 to vector<2x128xf32>
      %c0_11 = arith.constant 0 : index
      %c0_12 = arith.constant 0 : index
      %13 = vector.load %arg7[%c0_11, %c0_12] : memref<2x128xf32, #tpu.memory_space<vmem>>, vector<2x128xf32>
      tpu.vector_store %arg7[%c0_11, %c0_12], %12 {strides = array<i32>} : memref<2x128xf32, #tpu.memory_space<vmem>>, vector<2x128xf32>,
    } else {
    }
    %c0 = arith.constant 0 : index
    %c0_1 = arith.constant 0 : index
    %3 = vector.load %arg7[%c0, %c0_1] : memref<2x128xf32, #tpu.memory_space<vmem>>, vector<2x128xf32>
    %c0_2 = arith.constant 0 : index
    %c0_3 = arith.constant 0 : index
    %4 = vector.load %arg3[%c0_2, %c0_3] : memref<2x32xbf16, #tpu.memory_space<vmem>>, vector<2x32xbf16>
    %c0_4 = arith.constant 0 : index
    %c0_5 = arith.constant 0 : index
    %5 = vector.load %arg4[%c0_4, %c0_5] : memref<32x128xbf16, #tpu.memory_space<vmem>>, vector<32x128xbf16>
    %cst = arith.constant dense<0.000000e+00> : vector<2x128xf32>
    %6 = tpu.matmul %4, %5, %cst {dimension_numbers = #tpu.dot_dimension_numbers<[1], [0], [0], [1], [0, 0, 1, 1], [], []>} : vector<2x32xbf16>, vector<32x128xbf16>, vector<2x128xf32> -> vector<2x128xf32>
    %7 = arith.addf %3, %6 : vector<2x128xf32>
    %c0_6 = arith.constant 0 : index
    %c0_7 = arith.constant 0 : index
    %8 = vector.load %arg7[%c0_6, %c0_7] : memref<2x128xf32, #tpu.memory_space<vmem>>, vector<2x128xf32>
    tpu.vector_store %arg7[%c0_6, %c0_7], %7 {strides = array<i32>} : memref<2x128xf32, #tpu.memory_space<vmem>>, vector<2x128xf32>,
    %c0_i32_8 = arith.constant 0 : i32
    %9 = arith.cmpi eq, %arg2, %c0_i32_8 : i32
    %10 = arith.extui %9 : i1 to i32
    %c0_i32_9 = arith.constant 0 : i32
    %11 = arith.cmpi ne, %10, %c0_i32_9 : i32
    scf.if %11 {
      %c0_10 = arith.constant 0 : index
      %c0_11 = arith.constant 0 : index
      %12 = vector.load %arg7[%c0_10, %c0_11] : memref<2x128xf32, #tpu.memory_space<vmem>>, vector<2x128xf32>
      %c0_12 = arith.constant 0 : index
      %c0_13 = arith.constant 0 : index
      %13 = vector.load %arg5[%c0_12, %c0_13] : memref<1x128xf32, #tpu.memory_space<vmem>>, vector<1x128xf32>
      %14 = vector.broadcast %13 : vector<1x128xf32> to vector<2x128xf32>
      %15 = arith.addf %12, %14 : vector<2x128xf32>
      %c0_14 = arith.constant 0 : index
      %c0_15 = arith.constant 0 : index
      %16 = vector.load %arg6[%c0_14, %c0_15] : memref<2x128xf32, #tpu.memory_space<vmem>>, vector<2x128xf32>
      tpu.vector_store %arg6[%c0_14, %c0_15], %15 {strides = array<i32>} : memref<2x128xf32, #tpu.memory_space<vmem>>, vector<2x128xf32>,
    } else {
    }
    return
  }
  func.func @transform_0(%arg0: i32, %arg1: i32, %arg2: i32) -> (i32, i32) {
    %c0_i32 = arith.constant 0 : i32
    return %arg0, %arg2 : i32, i32
  }
  func.func @transform_1(%arg0: i32, %arg1: i32, %arg2: i32) -> (i32, i32) {
    %c0_i32 = arith.constant 0 : i32
    return %arg2, %arg1 : i32, i32
  }
  func.func @transform_2(%arg0: i32, %arg1: i32, %arg2: i32) -> (i32, i32) {
    %c0_i32 = arith.constant 0 : i32
    %c0_i32_0 = arith.constant 0 : i32
    return %c0_i32, %arg1 : i32, i32
  }
  func.func @transform_3(%arg0: i32, %arg1: i32, %arg2: i32) -> (i32, i32) {
    %c0_i32 = arith.constant 0 : i32
    return %arg0, %arg1 : i32, i32
  }
}

</mosaic_0001>

<llo_original>
// kernel: _fused_forward.1
$region0: #{_fused_forward.1}
  #allocation0 [shape = 'u32[]', space=smem, size = 0x4, offset = 0x4, fixed_abs, tag = 'smem constant byte address 0x4 - core index']
  #allocation1 [shape = 'u32[72,128]{1,0:T(1,128)}', space=vmem, size = 0x9000, scoped, tag = 'internal scratch']
  #allocation2 [shape = 'f32[2,128]{1,0:T(2,128)}', space=vmem, size = 0x400, scoped, tag = 'scratch operand']
  %s0 = inlined_call_operand.vmem [shape: bf16[2,32], index: 0, kind: input, shape index: {}]
  %s1 = inlined_call_operand.hbm [shape: bf16[32,128], index: 1, kind: input, shape index: {}]
  %s2 = inlined_call_operand.vmem [shape: f32[1,128], index: 2, kind: input, shape index: {}]
  %s3 = inlined_call_operand.vmem [shape: f32[2,128], index: 3, kind: output, shape index: {}]
  %s4 = sld [smem:[#allocation0]]
  $region34: #{_fused_forward.1} parent=0
    _
  %s6 = ssub.s32 1, %s4
  %s7 = scalar_select 0, %s6, %s4
  $region1: #{_fused_forward.1} parent=0
    #allocation3 [shape = 'u8[8192]{0}', space=vmem, size = 0x2000, scoped, tag = 'input window, operand 1, single buffered']
    #allocation4 [shape = 's32[1]{0}', space=sflag, size = 0x4, scoped, tag = 'scoped memory for _fused_forward.1']
    %8 = vsyncpa [#allocation4], 0
    // Predicated region
    $region2: #{_fused_forward.1} parent=1 // pred_check
      _
    $region3: #{_fused_forward.1} parent=1 // pred_check_branch
      %10 = sbr.rel (0) target = $region5
    $region4: #{_fused_forward.1} parent=1 // pred_region
      _
    $region5: #{_fused_forward.1} parent=1 // pred_fallthru
      _
    // Predicated region
    $region6: #{_fused_forward.1} parent=1 // pred_check
      _
    $region7: #{_fused_forward.1} parent=1 // pred_check_branch
      %12 = sbr.rel (0) target = $region9
    $region8: #{_fused_forward.1} parent=1 // pred_region
      %14 = vsyncadd [#allocation4], 0
      %s15 = sshll.u32 %s1, 4
      %s16 = int_to_ptr.hbm [resolvable:$true] %s15
      %s17 = sshll.u32 [#allocation3], 4
      %s18 = int_to_ptr.vmem [resolvable:$true] %s17
      %23 = dma.hbm_to_vmem [thread:$0]  %s16, 256, %s18, [#allocation4], 64, 64, 4
    $region9: #{_fused_forward.1} parent=1 // pred_fallthru
      _
    // Predicated region
    $region10: #{_fused_forward.1} parent=1 // pred_check
      _
    $region11: #{_fused_forward.1} parent=1 // pred_check_branch
      %25 = sbr.rel (0) target = $region13
    $region12: #{_fused_forward.1} parent=1 // pred_region
      _
    $region13: #{_fused_forward.1} parent=1 // pred_fallthru
      _
    // Predicated region
    $region14: #{_fused_forward.1} parent=1 // pred_check
      _
    $region15: #{_fused_forward.1} parent=1 // pred_check_branch
      %27 = sbr.rel (0) target = $region17
    $region16: #{_fused_forward.1} parent=1 // pred_region
      %29 = dma.done [#allocation4], 256
    $region17: #{_fused_forward.1} parent=1 // pred_fallthru
      _
    %p31 = scmp.eq.s32.totalorder 0, 0
    // Predicated region
    $region18: #{_fused_forward.1} parent=1 // pred_check
      %p32 = pneg %p31
    $region19: #{_fused_forward.1} parent=1 // pred_check_branch
      %34 = sbr.rel (%p32) target = $region21
    $region20: #{_fused_forward.1} parent=1 // pred_region
      %35 = vst [vmem:[#allocation2] sm:$0x3] 0.0
    $region21: #{_fused_forward.1} parent=1 // pred_fallthru
      _
    %v36 = vld [vmem:[#allocation2] sm:$0x3]
    %v37 = vld [vmem:[%s0] sm:$0x1]
    %v38 = vld [vmem:[#allocation3] sm:$0xf]
    %v39 = vld [vmem:[#allocation3 + $0x4] sm:$0xf]
    %v40 = vld [vmem:[#allocation3 + $0x8] sm:$0xf]
    %v41 = vld [vmem:[#allocation3 + $0xc] sm:$0xf]
    %v46 = vunpack.c.l.b16 %v38
    %v47 = vunpack.c.l.b16 %v39
    %v48 = vunpack.c.l.b16 %v40
    %v49 = vunpack.c.l.b16 %v41
    %v50 = vpack.c.b16 %v47, %v46
    %v51 = vpack.c.b16 %v49, %v48
    %vm54 = vcmask 261120
    %v56 = vsel %vm54, %v37, 0
    %58 = vmatpush.bf16.msra.mxu0 0
    %59 = vmatpush.bf16.msra.mxu0 0
    %60 = vmatpush.bf16.msra.mxu0 0
    %61 = vmatpush.bf16.msra.mxu0 0
    %62 = vmatpush.bf16.msra.mxu0 0
    %63 = vmatpush.bf16.msra.mxu0 0
    %64 = vmatpush.bf16.msra.mxu0 %v51
    %65 = vmatpush.bf16.msra.mxu0 %v50
    %66 = vmatmul.bf16.gmra.mxu0 %v56
    %v67 = vpop.f32.mrf.mxu0
    %v68 = vadd.f32 0.0, %v67
    %v69 = vpop.f32.mrf.mxu0
    %70 = vdwg.mxu0
    %v71 = vadd.f32 %v36, %v68
    %72 = vst [vmem:[#allocation2] sm:$0x3] %v71
    // Predicated region
    $region22: #{_fused_forward.1} parent=1 // pred_check
      %p73 = pneg %p31
    $region23: #{_fused_forward.1} parent=1 // pred_check_branch
      %75 = sbr.rel (%p73) target = $region25
    $region24: #{_fused_forward.1} parent=1 // pred_region
      %v76 = vld [vmem:[#allocation2] sm:$0x3]
      %v77 = vld [vmem:[%s2] sm:$0x1]
      %v79 = vperm.slane %v77, 0
      %v81 = vadd.f32 %v76, %v79
      %82 = vst [vmem:[%s3] sm:$0x3] %v81
    $region25: #{_fused_forward.1} parent=1 // pred_fallthru
      _
    // Predicated region
    $region26: #{_fused_forward.1} parent=1 // pred_check
      _
    $region27: #{_fused_forward.1} parent=1 // pred_check_branch
      %84 = sbr.rel (0) target = $region29
    $region28: #{_fused_forward.1} parent=1 // pred_region
      _
    $region29: #{_fused_forward.1} parent=1 // pred_fallthru
      _
    // Predicated region
    $region30: #{_fused_forward.1} parent=1 // pred_check
      _
    $region31: #{_fused_forward.1} parent=1 // pred_check_branch
      %86 = sbr.rel (0) target = $region33
    $region32: #{_fused_forward.1} parent=1 // pred_region
      _
    $region33: #{_fused_forward.1} parent=1 // pred_fallthru
      _
    %87 = vsyncpa [#allocation4], 1

</llo_original>
